<compile_context>
chip_gen: v7x
topology: tpu7x:2x2x1
jax: 0.10.0
libtpu: 0.0.40
codegen_flags: <defaults>
</compile_context>

<pallas_src>
import functools

import numpy as np
import jax
import jax.numpy as jnp
from jax import lax
from jax.experimental import pallas as pl
from jax.experimental.pallas import tpu as pltpu

# Constant buffers defined in the module's __init__ (deterministic, no checkpoint).
NEIGHBOR_LINK = [(1, 2), (2, 21), (3, 21), (4, 3), (5, 21), (6, 5), (7, 6), (8, 7),
                 (9, 21), (10, 9), (11, 10), (12, 11), (13, 1), (14, 13), (15, 14),
                 (16, 15), (17, 1), (18, 17), (19, 18), (20, 19), (22, 23), (23, 8),
                 (24, 25), (25, 12)]
JOINT_WEIGHTS = [0.02] * 10 + [0.04] * 5 + [0.02] * 10  # 25 joints
DELTA_T = 1.0 / 30.0


def _acc_bone_kernel(ref_ref, ad_ref, inc_ref, grp_ref, out_ref, *, n_coords):
    """Per-batch-tile partial sums for the 'acc-bone' perception loss.

    ref_ref/ad_ref : (tb, T, V*C)   f32 VMEM -- joint positions
    inc_ref        : (V*C, E*C)     f32 VMEM -- signed bone-incidence matrix
    grp_ref        : (E*C, E)       f32 VMEM -- per-bone coordinate-group sum
    out_ref        : (1, 8, 128)    f32 VMEM -- lanes 0/1/2 hold
                     [sum d^2, sum w*(2nd-diff d)^2, sum (refLen-adLen)^2]
    The 1/batch and 1/dt^4 scalings are applied outside on the reduced scalars.
    """
    ref = ref_ref[...]
    ad = ad_ref[...]

    d = ad - ref                                           # (tb, T, VC)
    s = ad + ref                                           # (tb, T, VC)
    vc = d.shape[-1]

    # ----- reconstruction loss partial: total squared error ------------------
    oloss_p = jnp.sum(d * d)

    # ----- joint-weighted acceleration partial --------------------------------
    # Linearity: 2nd temporal diff of (ad - ref) equals (adAcc - refAcc)*dt^2;
    # sign drops under the square, the 1/dt^4 factor moves to the final scalar.
    da = d[:, 2:, :] - 2.0 * d[:, 1:-1, :] + d[:, :-2, :]  # (tb, T-2, VC)
    lane_i = lax.broadcasted_iota(jnp.int32, (1, 1, vc), 2)
    lo = 10 * n_coords
    hi = 15 * n_coords
    w = jnp.where((lane_i >= lo) & (lane_i < hi), 0.04, 0.02)
    acc_p = jnp.sum(da * da * w)

    # ----- bone-length partial (MXU) -------------------------------------------
    #   gd[e,c] = (ad-ref)[a_e,c] - (ad-ref)[b_e,c]
    #   gs[e,c] = (ad+ref)[a_e,c] - (ad+ref)[b_e,c]
    #   sum_c gd*gs = adLen - refLen  (== -(refLen - adLen); squared below)
    d2 = d.reshape(-1, vc)                                 # (tb*T, VC)
    s2 = s.reshape(-1, vc)
    gd = jnp.dot(d2, inc_ref[...], preferred_element_type=jnp.float32)   # (tb*T, EC)
    gs = jnp.dot(s2, inc_ref[...], preferred_element_type=jnp.float32)
    db = jnp.dot(gd * gs, grp_ref[...], preferred_element_type=jnp.float32)  # (tb*T, E)
    bone_p = jnp.sum(db * db)

    # Lane-dense output block: partials in lanes 0/1/2 (replicated over sublanes).
    lane = lax.broadcasted_iota(jnp.int32, (1, 8, 128), 2)
    out_ref[...] = (jnp.where(lane == 0, oloss_p, 0.0)
                    + jnp.where(lane == 1, acc_p, 0.0)
                    + jnp.where(lane == 2, bone_p, 0.0))


def _pick_batch_tile(B, T, VC, target_bytes=4 << 20):
    """Largest divisor of B whose single-buffer per-array tile stays under target.

    Two inputs x double buffering keeps pipelined input VMEM under ~16 MiB,
    comfortably inside the scoped-VMEM limits of v5e/v6e/v7x.
    """
    row_bytes = T * VC * 4
    tb = int(max(1, min(B, target_bytes // max(row_bytes, 1))))
    while B % tb != 0:
        tb -= 1
    return tb


def perception_loss_acc_bone(ref_data, ad_data, recon_weight=0.4, bone_len_weight=0.6):
    """Pallas implementation of PercepertionLoss.forward with perpLossType='acc-bone'."""
    N, C, T, V, M = ref_data.shape
    B = N * M
    VC = V * C
    nl = np.asarray(NEIGHBOR_LINK, dtype=np.int32) - 1     # (E, 2), zero-indexed
    E = nl.shape[0]
    EC = E * C

    # Glue: permute NCTVM -> (N*M, T, V*C) exactly as the PyTorch module does.
    ref = jnp.transpose(ref_data, (0, 4, 2, 3, 1)).reshape(B, T, VC).astype(jnp.float32)
    ad = jnp.transpose(ad_data, (0, 4, 2, 3, 1)).reshape(B, T, VC).astype(jnp.float32)

    # Static bone matrices (built once on host, tiny: 75x72 and 72x24 f32).
    inc_np = np.zeros((VC, EC), np.float32)                # signed incidence
    grp_np = np.zeros((EC, E), np.float32)                 # per-bone coord sum
    for e in range(E):
        a, b = int(nl[e, 0]), int(nl[e, 1])
        for c in range(C):
            inc_np[a * C + c, e * C + c] = 1.0
            inc_np[b * C + c, e * C + c] = -1.0
            grp_np[e * C + c, e] = 1.0
    inc = jnp.asarray(inc_np)
    grp = jnp.asarray(grp_np)

    tb = _pick_batch_tile(B, T, VC)
    num_tiles = B // tb

    kernel = functools.partial(_acc_bone_kernel, n_coords=C)

    flops = (10 * B * T * VC                  # elementwise diffs / squares / weights
             + 2 * 2 * B * T * VC * EC        # two incidence matmuls
             + 2 * B * T * EC * E             # grouping matmul
             + 4 * B * T * EC)
    cost = pl.CostEstimate(
        flops=int(flops),
        transcendentals=0,
        bytes_accessed=int(2 * B * T * VC * 4 + (VC * EC + EC * E) * 4
                           + num_tiles * 8 * 128 * 4),
    )

    partials = pl.pallas_call(
        kernel,
        out_shape=jax.ShapeDtypeStruct((num_tiles, 8, 128), jnp.float32),
        grid=(num_tiles,),
        in_specs=[
            pl.BlockSpec((tb, T, VC), lambda i: (i, 0, 0)),
            pl.BlockSpec((tb, T, VC), lambda i: (i, 0, 0)),
            pl.BlockSpec((VC, EC), lambda i: (0, 0)),   # constant block, fetched once
            pl.BlockSpec((EC, E), lambda i: (0, 0)),
        ],
        out_specs=pl.BlockSpec((1, 8, 128), lambda i: (i, 0, 0)),
        compiler_params=pltpu.CompilerParams(
            dimension_semantics=("parallel",),
            vmem_limit_bytes=32 << 20),
        cost_estimate=cost,
    )(ref, ad, inc, grp)

    # Final tiny reduction + weighting in JAX (scalings moved out of the kernel).
    inv_b = 1.0 / float(B)
    oloss = jnp.sum(partials[:, 0, 0]) * inv_b
    joint_acc = jnp.sum(partials[:, 0, 1]) * inv_b / (DELTA_T ** 4)
    bone_loss = jnp.sum(partials[:, 0, 2]) * inv_b

    total = (bone_loss * (1.0 - recon_weight) * bone_len_weight
             + joint_acc * (1.0 - recon_weight) * (1.0 - bone_len_weight)
             + oloss * recon_weight)
    return total, jnp.stack([total, oloss, joint_acc, bone_loss])


def reference_acc_bone(ref_data, ad_data, recon_weight, bone_len_weight):
    """Pure-JAX transcription of the PyTorch forward (acc-bone branch) for checking."""
    N, C, T, V, M = ref_data.shape
    ref = jnp.transpose(ref_data, (0, 4, 2, 3, 1)).reshape(N * M, T, V, C)
    ad = jnp.transpose(ad_data, (0, 4, 2, 3, 1)).reshape(N * M, T, V, C)

    diff = ad - ref
    squared = jnp.sum(diff * diff, axis=-1)
    square_cost = jnp.sum(jnp.sum(squared, axis=-1), axis=-1)
    oloss = jnp.mean(square_cost, axis=-1)

    dt = DELTA_T
    ref_acc = (ref[:, 2:] - 2 * ref[:, 1:-1] + ref[:, :-2]) / dt / dt
    ad_acc = (ad[:, 2:] - 2 * ad[:, 1:-1] + ad[:, :-2]) / dt / dt
    d = ref_acc - ad_acc
    sq = jnp.sum(d * d, axis=-1)
    jw = jnp.asarray(JOINT_WEIGHTS, jnp.float32).reshape(1, 1, V)
    joint_acc = jnp.mean(jnp.sum(jnp.sum(sq * jw, axis=-1), axis=-1), axis=-1)

    nl = np.asarray(NEIGHBOR_LINK, np.int32) - 1
    adv = ad[:, :, nl[:, 0], :] - ad[:, :, nl[:, 1], :]
    ad_len = jnp.sum(adv * adv, axis=-1)
    refv = ref[:, :, nl[:, 0], :] - ref[:, :, nl[:, 1], :]
    ref_len = jnp.sum(refv * refv, axis=-1)
    dbv = ref_len - ad_len
    bone = jnp.mean(jnp.sum(jnp.sum(dbv * dbv, axis=-1), axis=-1), axis=-1)

    total = (bone * (1 - recon_weight) * bone_len_weight
             + joint_acc * (1 - recon_weight) * (1 - bone_len_weight)
             + oloss * recon_weight)
    return total, oloss, joint_acc, bone


if __name__ == "__main__":
    # Shapes implied by the module: V must be 25 joints, C=3 coords, M skeletons.
    N, C, T, V, M = 2, 3, 8, 25, 2
    recon_weight, bone_len_weight = 0.4, 0.6

    key = jax.random.PRNGKey(0)
    k1, k2 = jax.random.split(key)
    ref_data = jax.random.normal(k1, (N, C, T, V, M), dtype=jnp.float32)
    ad_data = ref_data + 0.05 * jax.random.normal(k2, (N, C, T, V, M), dtype=jnp.float32)

    total, comps = perception_loss_acc_bone(ref_data, ad_data, recon_weight, bone_len_weight)
    total = jax.block_until_ready(total)
    comps = jax.block_until_ready(comps)

    exp_total, exp_oloss, exp_acc, exp_bone = reference_acc_bone(
        ref_data, ad_data, recon_weight, bone_len_weight)

    # Total is dominated by the VPU-exact terms -> tight tolerance.
    np.testing.assert_allclose(np.asarray(total), np.asarray(exp_total),
                               rtol=2e-4, atol=1e-3)
    # Per-component check; bone term goes through the MXU, allow a looser bound.
    np.testing.assert_allclose(np.asarray(comps[1:]),
                               np.asarray([exp_oloss, exp_acc, exp_bone]),
                               rtol=1e-2, atol=1e-3)

    print("KERNEL_OK")
</pallas_src>

<mosaic_0001>
module attributes {stable_mosaic.version = 11 : i64} {
  func.func @_acc_bone_kernel(%arg0: i32, %arg1: memref<4x8x75xf32, #tpu.memory_space<vmem>>, %arg2: memref<4x8x75xf32, #tpu.memory_space<vmem>>, %arg3: memref<75x72xf32, #tpu.memory_space<vmem>>, %arg4: memref<72x24xf32, #tpu.memory_space<vmem>>, %arg5: memref<1x8x128xf32, #tpu.memory_space<vmem>>) attributes {dimension_semantics = [#tpu.dimension_semantics<parallel>], iteration_bounds = array<i64: 1>, scalar_prefetch = 0 : i64, scratch_operands = 0 : i64, tpu.core_type = #tpu.core_type<tc>, window_params = [{transform_indices = @transform_0, window_bounds = array<i64: 4, 8, 75>}, {transform_indices = @transform_1, window_bounds = array<i64: 4, 8, 75>}, {pipeline_mode = #tpu.pipeline_mode<synchronous>, transform_indices = @transform_2, window_bounds = array<i64: 75, 72>}, {pipeline_mode = #tpu.pipeline_mode<synchronous>, transform_indices = @transform_3, window_bounds = array<i64: 72, 24>}, {transform_indices = @transform_4, window_bounds = array<i64: 1, 8, 128>}]} {
    %c0 = arith.constant 0 : index
    %c0_0 = arith.constant 0 : index
    %c0_1 = arith.constant 0 : index
    %0 = vector.load %arg1[%c0, %c0_0, %c0_1] : memref<4x8x75xf32, #tpu.memory_space<vmem>>, vector<4x8x75xf32>
    %c0_2 = arith.constant 0 : index
    %c0_3 = arith.constant 0 : index
    %c0_4 = arith.constant 0 : index
    %1 = vector.load %arg2[%c0_2, %c0_3, %c0_4] : memref<4x8x75xf32, #tpu.memory_space<vmem>>, vector<4x8x75xf32>
    %2 = arith.subf %1, %0 : vector<4x8x75xf32>
    %3 = arith.addf %1, %0 : vector<4x8x75xf32>
    %4 = arith.mulf %2, %2 : vector<4x8x75xf32>
    %5 = vector.shape_cast %4 : vector<4x8x75xf32> to vector<1x4x8x75xf32>
    %cst = arith.constant dense<0.000000e+00> : vector<1xf32>
    %6 = vector.multi_reduction <add>, %5, %cst [1, 2, 3] : vector<1x4x8x75xf32> to vector<1xf32>
    %7 = vector.shape_cast %6 : vector<1xf32> to vector<1x1x1x1xf32>
    %8 = vector.extract %7[0, 0, 0, 0] : f32 from vector<1x1x1x1xf32>
    %9 = vector.extract_strided_slice %2 {offsets = [0, 2, 0], sizes = [4, 6, 75], strides = [1, 1, 1]} : vector<4x8x75xf32> to vector<4x6x75xf32>
    %10 = vector.extract_strided_slice %2 {offsets = [0, 1, 0], sizes = [4, 6, 75], strides = [1, 1, 1]} : vector<4x8x75xf32> to vector<4x6x75xf32>
    %cst_5 = arith.constant 2.000000e+00 : f32
    %11 = vector.broadcast %cst_5 : f32 to vector<4x6x75xf32>
    %12 = arith.mulf %11, %10 : vector<4x6x75xf32>
    %13 = arith.subf %9, %12 : vector<4x6x75xf32>
    %14 = vector.extract_strided_slice %2 {offsets = [0, 0, 0], sizes = [4, 6, 75], strides = [1, 1, 1]} : vector<4x8x75xf32> to vector<4x6x75xf32>
    %15 = arith.addf %13, %14 : vector<4x6x75xf32>
    %16 = tpu.iota {dimensions = array<i32: 2>} : vector<1x1x75xi32>
    %c30_i32 = arith.constant 30 : i32
    %17 = vector.broadcast %c30_i32 : i32 to vector<1x1x75xi32>
    %18 = arith.cmpi sge, %16, %17 : vector<1x1x75xi32>
    %c45_i32 = arith.constant 45 : i32
    %19 = vector.broadcast %c45_i32 : i32 to vector<1x1x75xi32>
    %20 = arith.cmpi slt, %16, %19 : vector<1x1x75xi32>
    %21 = arith.andi %18, %20 : vector<1x1x75xi1>
    %cst_6 = arith.constant 4.000000e-02 : f32
    %cst_7 = arith.constant 2.000000e-02 : f32
    %22 = vector.broadcast %cst_6 : f32 to vector<1x1x75xf32>
    %23 = vector.broadcast %cst_7 : f32 to vector<1x1x75xf32>
    %24 = arith.select %21, %22, %23 : vector<1x1x75xi1>, vector<1x1x75xf32>
    %25 = arith.mulf %15, %15 : vector<4x6x75xf32>
    %26 = vector.broadcast %24 : vector<1x1x75xf32> to vector<4x6x75xf32>
    %27 = arith.mulf %25, %26 : vector<4x6x75xf32>
    %28 = vector.shape_cast %27 : vector<4x6x75xf32> to vector<1x4x6x75xf32>
    %cst_8 = arith.constant dense<0.000000e+00> : vector<1xf32>
    %29 = vector.multi_reduction <add>, %28, %cst_8 [1, 2, 3] : vector<1x4x6x75xf32> to vector<1xf32>
    %30 = vector.shape_cast %29 : vector<1xf32> to vector<1x1x1x1xf32>
    %31 = vector.extract %30[0, 0, 0, 0] : f32 from vector<1x1x1x1xf32>
    %32 = vector.shape_cast %2 : vector<4x8x75xf32> to vector<32x75xf32>
    %33 = vector.shape_cast %3 : vector<4x8x75xf32> to vector<32x75xf32>
    %c0_9 = arith.constant 0 : index
    %c0_10 = arith.constant 0 : index
    %34 = vector.load %arg3[%c0_9, %c0_10] : memref<75x72xf32, #tpu.memory_space<vmem>>, vector<75x72xf32>
    %cst_11 = arith.constant dense<0.000000e+00> : vector<32x72xf32>
    %35 = tpu.matmul %32, %34, %cst_11 {dimension_numbers = #tpu.dot_dimension_numbers<[1], [0], [0], [1], [0, 0, 1, 1], [], []>} : vector<32x75xf32>, vector<75x72xf32>, vector<32x72xf32> -> vector<32x72xf32>
    %c0_12 = arith.constant 0 : index
    %c0_13 = arith.constant 0 : index
    %36 = vector.load %arg3[%c0_12, %c0_13] : memref<75x72xf32, #tpu.memory_space<vmem>>, vector<75x72xf32>
    %cst_14 = arith.constant dense<0.000000e+00> : vector<32x72xf32>
    %37 = tpu.matmul %33, %36, %cst_14 {dimension_numbers = #tpu.dot_dimension_numbers<[1], [0], [0], [1], [0, 0, 1, 1], [], []>} : vector<32x75xf32>, vector<75x72xf32>, vector<32x72xf32> -> vector<32x72xf32>
    %38 = arith.mulf %35, %37 : vector<32x72xf32>
    %c0_15 = arith.constant 0 : index
    %c0_16 = arith.constant 0 : index
    %39 = vector.load %arg4[%c0_15, %c0_16] : memref<72x24xf32, #tpu.memory_space<vmem>>, vector<72x24xf32>
    %cst_17 = arith.constant dense<0.000000e+00> : vector<32x24xf32>
    %40 = tpu.matmul %38, %39, %cst_17 {dimension_numbers = #tpu.dot_dimension_numbers<[1], [0], [0], [1], [0, 0, 1, 1], [], []>} : vector<32x72xf32>, vector<72x24xf32>, vector<32x24xf32> -> vector<32x24xf32>
    %41 = arith.mulf %40, %40 : vector<32x24xf32>
    %42 = vector.shape_cast %41 : vector<32x24xf32> to vector<1x32x24xf32>
    %cst_18 = arith.constant dense<0.000000e+00> : vector<1xf32>
    %43 = vector.multi_reduction <add>, %42, %cst_18 [1, 2] : vector<1x32x24xf32> to vector<1xf32>
    %44 = vector.shape_cast %43 : vector<1xf32> to vector<1x1x1xf32>
    %45 = vector.extract %44[0, 0, 0] : f32 from vector<1x1x1xf32>
    %46 = tpu.iota {dimensions = array<i32: 2>} : vector<1x8x128xi32>
    %c0_i32 = arith.constant 0 : i32
    %47 = vector.broadcast %c0_i32 : i32 to vector<1x8x128xi32>
    %48 = arith.cmpi eq, %46, %47 : vector<1x8x128xi32>
    %cst_19 = arith.constant 0.000000e+00 : f32
    %49 = vector.broadcast %8 : f32 to vector<1x8x128xf32>
    %50 = vector.broadcast %cst_19 : f32 to vector<1x8x128xf32>
    %51 = arith.select %48, %49, %50 : vector<1x8x128xi1>, vector<1x8x128xf32>
    %c1_i32 = arith.constant 1 : i32
    %52 = vector.broadcast %c1_i32 : i32 to vector<1x8x128xi32>
    %53 = arith.cmpi eq, %46, %52 : vector<1x8x128xi32>
    %cst_20 = arith.constant 0.000000e+00 : f32
    %54 = vector.broadcast %31 : f32 to vector<1x8x128xf32>
    %55 = vector.broadcast %cst_20 : f32 to vector<1x8x128xf32>
    %56 = arith.select %53, %54, %55 : vector<1x8x128xi1>, vector<1x8x128xf32>
    %57 = arith.addf %51, %56 : vector<1x8x128xf32>
    %c2_i32 = arith.constant 2 : i32
    %58 = vector.broadcast %c2_i32 : i32 to vector<1x8x128xi32>
    %59 = arith.cmpi eq, %46, %58 : vector<1x8x128xi32>
    %cst_21 = arith.constant 0.000000e+00 : f32
    %60 = vector.broadcast %45 : f32 to vector<1x8x128xf32>
    %61 = vector.broadcast %cst_21 : f32 to vector<1x8x128xf32>
    %62 = arith.select %59, %60, %61 : vector<1x8x128xi1>, vector<1x8x128xf32>
    %63 = arith.addf %57, %62 : vector<1x8x128xf32>
    %c0_22 = arith.constant 0 : index
    %c0_23 = arith.constant 0 : index
    %c0_24 = arith.constant 0 : index
    %64 = vector.load %arg5[%c0_22, %c0_23, %c0_24] : memref<1x8x128xf32, #tpu.memory_space<vmem>>, vector<1x8x128xf32>
    tpu.vector_store %arg5[%c0_22, %c0_23, %c0_24], %63 {strides = array<i32>} : memref<1x8x128xf32, #tpu.memory_space<vmem>>, vector<1x8x128xf32>,
    return
  }
  func.func @transform_0(%arg0: i32) -> (i32, i32, i32) {
    %c0_i32 = arith.constant 0 : i32
    %c0_i32_0 = arith.constant 0 : i32
    %c0_i32_1 = arith.constant 0 : i32
    return %arg0, %c0_i32, %c0_i32_0 : i32, i32, i32
  }
  func.func @transform_1(%arg0: i32) -> (i32, i32, i32) {
    %c0_i32 = arith.constant 0 : i32
    %c0_i32_0 = arith.constant 0 : i32
    %c0_i32_1 = arith.constant 0 : i32
    return %arg0, %c0_i32, %c0_i32_0 : i32, i32, i32
  }
  func.func @transform_2(%arg0: i32) -> (i32, i32) {
    %c0_i32 = arith.constant 0 : i32
    %c0_i32_0 = arith.constant 0 : i32
    %c0_i32_1 = arith.constant 0 : i32
    return %c0_i32, %c0_i32_0 : i32, i32
  }
  func.func @transform_3(%arg0: i32) -> (i32, i32) {
    %c0_i32 = arith.constant 0 : i32
    %c0_i32_0 = arith.constant 0 : i32
    %c0_i32_1 = arith.constant 0 : i32
    return %c0_i32, %c0_i32_0 : i32, i32
  }
  func.func @transform_4(%arg0: i32) -> (i32, i32, i32) {
    %c0_i32 = arith.constant 0 : i32
    %c0_i32_0 = arith.constant 0 : i32
    %c0_i32_1 = arith.constant 0 : i32
    return %arg0, %c0_i32, %c0_i32_0 : i32, i32, i32
  }
}

</mosaic_0001>

<llo_original>
// kernel: tpu_custom_call.1
$region0: #{tpu_custom_call.1}
  #allocation0 [shape = 'u32[]', space=smem, size = 0x4, offset = 0x4, fixed_abs, tag = 'smem constant byte address 0x4 - core index']
  #allocation1 [shape = 'u32[144,128]{1,0:T(1,128)}', space=vmem, size = 0x12000, scoped, tag = 'internal scratch']
  %s0 = inlined_call_operand.vmem [shape: f32[4,8,75], index: 0, kind: input, shape index: {}]
  %s1 = inlined_call_operand.vmem [shape: f32[4,8,75], index: 1, kind: input, shape index: {}]
  %s2 = inlined_call_operand.vmem [shape: f32[75,72], index: 2, kind: input, shape index: {}]
  %s3 = inlined_call_operand.vmem [shape: f32[72,24], index: 3, kind: input, shape index: {}]
  %s4 = inlined_call_operand.hbm [shape: f32[1,8,128], index: 4, kind: output, shape index: {}]
  %s5 = sld [smem:[#allocation0]]
  $region26: #{tpu_custom_call.1} parent=0
    _
  %s7 = ssub.s32 1, %s5
  %s8 = scalar_select 0, %s7, %s5
  $region1: #{tpu_custom_call.1} parent=0
    #allocation2 [shape = 'u8[4096]{0}', space=vmem, size = 0x1000, scoped, tag = 'output window, operand 0, single buffered']
    #allocation3 [shape = 's32[1]{0}', space=sflag, size = 0x4, scoped, tag = 'scoped memory for tpu_custom_call.1']
    %9 = vsyncpa [#allocation3], 0
    // Predicated region
    $region2: #{tpu_custom_call.1} parent=1 // pred_check
      _
    $region3: #{tpu_custom_call.1} parent=1 // pred_check_branch
      %11 = sbr.rel (0) target = $region5
    $region4: #{tpu_custom_call.1} parent=1 // pred_region
      _
    $region5: #{tpu_custom_call.1} parent=1 // pred_fallthru
      _
    // Predicated region
    $region6: #{tpu_custom_call.1} parent=1 // pred_check
      _
    $region7: #{tpu_custom_call.1} parent=1 // pred_check_branch
      %13 = sbr.rel (0) target = $region9
    $region8: #{tpu_custom_call.1} parent=1 // pred_region
      _
    $region9: #{tpu_custom_call.1} parent=1 // pred_fallthru
      _
    // Predicated region
    $region10: #{tpu_custom_call.1} parent=1 // pred_check
      _
    $region11: #{tpu_custom_call.1} parent=1 // pred_check_branch
      %15 = sbr.rel (0) target = $region13
    $region12: #{tpu_custom_call.1} parent=1 // pred_region
      _
    $region13: #{tpu_custom_call.1} parent=1 // pred_fallthru
      _
    // Predicated region
    $region14: #{tpu_custom_call.1} parent=1 // pred_check
      _
    $region15: #{tpu_custom_call.1} parent=1 // pred_check_branch
      %17 = sbr.rel (0) target = $region17
    $region16: #{tpu_custom_call.1} parent=1 // pred_region
      _
    $region17: #{tpu_custom_call.1} parent=1 // pred_fallthru
      _
    %v18 = vld [vmem:[%s0] sm:$0xff]
    %v19 = vld [vmem:[%s0 + $0x8] sm:$0xff]
    %v20 = vld [vmem:[%s0 + $0x10] sm:$0xff]
    %v21 = vld [vmem:[%s0 + $0x18] sm:$0xff]
    %v22 = vld [vmem:[%s1] sm:$0xff]
    %v23 = vld [vmem:[%s1 + $0x8] sm:$0xff]
    %v24 = vld [vmem:[%s1 + $0x10] sm:$0xff]
    %v25 = vld [vmem:[%s1 + $0x18] sm:$0xff]
    %v26 = vsub.f32 %v22, %v18
    %v27 = vsub.f32 %v23, %v19
    %v28 = vsub.f32 %v24, %v20
    %v29 = vsub.f32 %v25, %v21
    %v30 = vadd.f32 %v22, %v18
    %v31 = vadd.f32 %v23, %v19
    %v32 = vadd.f32 %v24, %v20
    %v33 = vadd.f32 %v25, %v21
    %v34 = vmul.f32 %v26, %v26
    %v35 = vmul.f32 %v27, %v27
    %v36 = vmul.f32 %v28, %v28
    %v37 = vmul.f32 %v29, %v29
    %vm38 = vcmask 613376
    %v39 = vsel %vm38, %v34, 0.0
    %v40 = vsel %vm38, %v35, 0.0
    %v41 = vadd.f32 %v39, %v40
    %v42 = vsel %vm38, %v36, 0.0
    %v43 = vadd.f32 %v41, %v42
    %v44 = vsel %vm38, %v37, 0.0
    %v45 = vadd.f32 %v43, %v44
    %46 = vadd.xlane.f32.xlu0 %v45
    %v47 = vpop.xlane.xlu0 %46
    %v48 = vrot.slane %v47, 4
    %v49 = vadd.f32 %v47, %v48
    %v50 = vrot.slane %v49, 2
    %v51 = vadd.f32 %v49, %v50
    %v52 = vrot.slane %v51, 1
    %v53 = vadd.f32 %v51, %v52
    %s54 = vtos %v53
    %v55 = vmul.f32 %v26, 2.0
    %v56 = vmul.f32 %v27, 2.0
    %v57 = vmul.f32 %v28, 2.0
    %v58 = vmul.f32 %v29, 2.0
    %v63 = vrot.slane %v55, 7
    %v64 = vrot.slane %v56, 7
    %v65 = vrot.slane %v57, 7
    %v66 = vrot.slane %v58, 7
    %v71 = vsub.f32 %v26, %v63
    %v72 = vsub.f32 %v27, %v64
    %v73 = vsub.f32 %v28, %v65
    %v74 = vsub.f32 %v29, %v66
    %v79 = vrot.slane %v26, 6
    %v80 = vrot.slane %v27, 6
    %v81 = vrot.slane %v28, 6
    %v82 = vrot.slane %v29, 6
    %v87 = vadd.f32 %v71, %v79
    %v88 = vadd.f32 %v72, %v80
    %v89 = vadd.f32 %v73, %v81
    %v90 = vadd.f32 %v74, %v82
    %v91 = vlaneseq
    %v92 = vand.u32 %v91, 127
    %vm93 = vcmp.ge.s32.totalorder %v92, 30
    %vm94 = vcmp.lt.s32.totalorder %v92, 45
    %vm95 = vmand %vm93, %vm94
    %v96 = vsel %vm95, 0.04, 0.02
    %v97 = vmul.f32 %v87, %v87
    %v98 = vmul.f32 %v88, %v88
    %v99 = vmul.f32 %v89, %v89
    %v100 = vmul.f32 %v90, %v90
    %v101 = vmul.f32 %v97, %v96
    %v102 = vmul.f32 %v98, %v96
    %v103 = vmul.f32 %v99, %v96
    %v104 = vmul.f32 %v100, %v96
    %v109 = vrot.slane %v101, 2
    %v110 = vrot.slane %v102, 2
    %v111 = vrot.slane %v103, 2
    %v112 = vrot.slane %v104, 2
    %vm117 = vcmask 611328
    %v118 = vsel %vm117, %v109, 0.0
    %v119 = vsel %vm117, %v110, 0.0
    %v120 = vadd.f32 %v118, %v119
    %v121 = vsel %vm117, %v111, 0.0
    %v122 = vadd.f32 %v120, %v121
    %v123 = vsel %vm117, %v112, 0.0
    %v124 = vadd.f32 %v122, %v123
    %125 = vadd.xlane.f32.xlu0 %v124
    %v126 = vpop.xlane.xlu0 %125
    %v127 = vrot.slane %v126, 4
    %v128 = vadd.f32 %v126, %v127
    %v129 = vrot.slane %v128, 2
    %v130 = vadd.f32 %v128, %v129
    %v131 = vrot.slane %v130, 1
    %v132 = vadd.f32 %v130, %v131
    %s133 = vtos %v132
    %v134 = vld [vmem:[%s2] sm:$0xff]
    %v135 = vld [vmem:[%s2 + $0x8] sm:$0xff]
    %v136 = vld [vmem:[%s2 + $0x10] sm:$0xff]
    %v137 = vld [vmem:[%s2 + $0x18] sm:$0xff]
    %v138 = vld [vmem:[%s2 + $0x20] sm:$0xff]
    %v139 = vld [vmem:[%s2 + $0x28] sm:$0xff]
    %v140 = vld [vmem:[%s2 + $0x30] sm:$0xff]
    %v141 = vld [vmem:[%s2 + $0x38] sm:$0xff]
    %v142 = vld [vmem:[%s2 + $0x40] sm:$0xff]
    %v143 = vld [vmem:[%s2 + $0x48] sm:$0x7]
    %v144 = vsel %vm38, %v26, 0
    %v146 = vsel %vm38, %v27, 0
    %v148 = vsel %vm38, %v28, 0
    %v150 = vsel %vm38, %v29, 0
    %vm152 = vcmask 1042432
    %v154 = vsel %vm152, %v143, 0
    %156 = vmatprep.subr.mxu0 0.0
    %157 = vmatpush1.msra.mxu0 %v134
    %158 = vmatprep.subr.mxu0 0.0
    %159 = vmatpush1.msra.mxu0 %v135
    %160 = vmatprep.subr.mxu0 0.0
    %161 = vmatpush1.msra.mxu0 %v136
    %162 = vmatprep.subr.mxu0 0.0
    %163 = vmatpush1.msra.mxu0 %v137
    %164 = vmatprep.subr.mxu0 0.0
    %165 = vmatpush1.msra.mxu0 %v138
    %166 = vmatprep.subr.mxu0 0.0
    %167 = vmatpush1.msra.mxu0 %v139
    %168 = vmatprep.subr.mxu0 0.0
    %169 = vmatpush1.msra.mxu0 %v140
    %170 = vmatprep.subr.mxu0 0.0
    %171 = vmatpush1.msra.mxu0 %v141
    %172 = vmatprep.subr.mxu0 0.0
    %173 = vmatpush1.msra.mxu0 %v142
    %174 = vmatprep.subr.mxu0 0.0
    %175 = vmatpush1.msra.mxu0 %v154
    %176 = vmatprep.subr.mxu0 0.0
    %177 = vmatpush1.msra.mxu0 0.0
    %178 = vmatprep.subr.mxu0 0.0
    %179 = vmatpush1.msra.mxu0 0.0
    %180 = vmatprep.subr.mxu0 0.0
    %181 = vmatpush1.msra.mxu0 0.0
    %182 = vmatprep.subr.mxu0 0.0
    %183 = vmatpush1.msra.mxu0 0.0
    %184 = vmatprep.subr.mxu0 0.0
    %185 = vmatpush1.msra.mxu0 0.0
    %186 = vmatprep.subr.mxu0 0.0
    %187 = vmatpush1.msra.mxu0 0.0
    %188 = vmatprep.subr.mxu0 0.0
    %189 = vmatpush1.msra.mxu0 0.0
    %190 = vmatprep.subr.mxu0 0.0
    %191 = vmatpush1.msra.mxu0 0.0
    %192 = vmatprep.subr.mxu0 0.0
    %193 = vmatpush1.msra.mxu0 0.0
    %194 = vmatprep.subr.mxu0 0.0
    %195 = vmatpush1.msra.mxu0 0.0
    %196 = vmatprep.subr.mxu0 0.0
    %197 = vmatpush1.msra.mxu0 0.0
    %198 = vmatprep.subr.mxu0 0.0
    %199 = vmatpush1.msra.mxu0 0.0
    %200 = vmatprep.subr.mxu0 0.0
    %201 = vmatpush1.msra.mxu0 0.0
    %202 = vmatprep.subr.mxu0 0.0
    %203 = vmatpush1.msra.mxu0 0.0
    %204 = vmatprep.subr.mxu0 0.0
    %205 = vmatpush1.msra.mxu0 0.0
    %206 = vmatprep.subr.mxu0 0.0
    %207 = vmatpush1.msra.mxu0 0.0
    %208 = vmatprep.subr.mxu0 0.0
    %209 = vmatpush1.msra.mxu0 0.0
    %210 = vmatprep.subr.mxu0 0.0
    %211 = vmatpush1.msra.mxu0 0.0
    %212 = vmatprep.subr.mxu0 0.0
    %213 = vmatpush1.msra.mxu0 0.0
    %214 = vmatprep.subr.mxu0 0.0
    %215 = vmatpush1.msra.mxu0 0.0
    %216 = vmatprep.subr.mxu0 0.0
    %217 = vmatpush1.msra.mxu0 0.0
    %218 = vmatprep.subr.mxu0 0.0
    %219 = vmatpush1.msra.mxu0 0.0
    %220 = vmatprep.mubr.f32.mxu0 0.0
    %221 = vmatmul.mubr.f32.gmra.mrb[0].mxu0 %v144
    %v222 = vpop.f32.mrb[0].mxu0
    %v223 = vadd.f32 0.0, %v222
    %v224 = vpop.f32.mrb[0].mxu0
    %225 = vmatprep.mubr.f32.mxu0 0.0
    %226 = vmatmul.mubr.f32.gmra.mrb[0].mxu0 %v146
    %v227 = vpop.f32.mrb[0].mxu0
    %v228 = vadd.f32 0.0, %v227
    %v229 = vpop.f32.mrb[0].mxu0
    %230 = vmatprep.mubr.f32.mxu0 0.0
    %231 = vmatmul.mubr.f32.gmra.mrb[0].mxu0 %v148
    %v232 = vpop.f32.mrb[0].mxu0
    %v233 = vadd.f32 0.0, %v232
    %v234 = vpop.f32.mrb[0].mxu0
    %235 = vmatprep.mubr.f32.mxu0 0.0
    %236 = vmatmul.mubr.f32.gmra.mrb[0].mxu0 %v150
    %v237 = vpop.f32.mrb[0].mxu0
    %v238 = vadd.f32 0.0, %v237
    %v239 = vpop.f32.mrb[0].mxu0
    %240 = vdwg.mxu0
    %v242 = vsel %vm38, %v30, 0
    %v245 = vsel %vm38, %v31, 0
    %v248 = vsel %vm38, %v32, 0
    %v251 = vsel %vm38, %v33, 0
    %253 = vmatprep.subr.mxu0 0.0
    %254 = vmatpush1.msra.mxu0 %v134
    %255 = vmatprep.subr.mxu0 0.0
    %256 = vmatpush1.msra.mxu0 %v135
    %257 = vmatprep.subr.mxu0 0.0
    %258 = vmatpush1.msra.mxu0 %v136
    %259 = vmatprep.subr.mxu0 0.0
    %260 = vmatpush1.msra.mxu0 %v137
    %261 = vmatprep.subr.mxu0 0.0
    %262 = vmatpush1.msra.mxu0 %v138
    %263 = vmatprep.subr.mxu0 0.0
    %264 = vmatpush1.msra.mxu0 %v139
    %265 = vmatprep.subr.mxu0 0.0
    %266 = vmatpush1.msra.mxu0 %v140
    %267 = vmatprep.subr.mxu0 0.0
    %268 = vmatpush1.msra.mxu0 %v141
    %269 = vmatprep.subr.mxu0 0.0
    %270 = vmatpush1.msra.mxu0 %v142
    %271 = vmatprep.subr.mxu0 0.0
    %272 = vmatpush1.msra.mxu0 %v154
    %273 = vmatprep.subr.mxu0 0.0
    %274 = vmatpush1.msra.mxu0 0.0
    %275 = vmatprep.subr.mxu0 0.0
    %276 = vmatpush1.msra.mxu0 0.0
    %277 = vmatprep.subr.mxu0 0.0
    %278 = vmatpush1.msra.mxu0 0.0
    %279 = vmatprep.subr.mxu0 0.0
    %280 = vmatpush1.msra.mxu0 0.0
    %281 = vmatprep.subr.mxu0 0.0
    %282 = vmatpush1.msra.mxu0 0.0
    %283 = vmatprep.subr.mxu0 0.0
    %284 = vmatpush1.msra.mxu0 0.0
    %285 = vmatprep.subr.mxu0 0.0
    %286 = vmatpush1.msra.mxu0 0.0
    %287 = vmatprep.subr.mxu0 0.0
    %288 = vmatpush1.msra.mxu0 0.0
    %289 = vmatprep.subr.mxu0 0.0
    %290 = vmatpush1.msra.mxu0 0.0
    %291 = vmatprep.subr.mxu0 0.0
    %292 = vmatpush1.msra.mxu0 0.0
    %293 = vmatprep.subr.mxu0 0.0
    %294 = vmatpush1.msra.mxu0 0.0
    %295 = vmatprep.subr.mxu0 0.0
    %296 = vmatpush1.msra.mxu0 0.0
    %297 = vmatprep.subr.mxu0 0.0
    %298 = vmatpush1.msra.mxu0 0.0
    %299 = vmatprep.subr.mxu0 0.0
    %300 = vmatpush1.msra.mxu0 0.0
    %301 = vmatprep.subr.mxu0 0.0
    %302 = vmatpush1.msra.mxu0 0.0
    %303 = vmatprep.subr.mxu0 0.0
    %304 = vmatpush1.msra.mxu0 0.0
    %305 = vmatprep.subr.mxu0 0.0
    %306 = vmatpush1.msra.mxu0 0.0
    %307 = vmatprep.subr.mxu0 0.0
    %308 = vmatpush1.msra.mxu0 0.0
    %309 = vmatprep.subr.mxu0 0.0
    %310 = vmatpush1.msra.mxu0 0.0
    %311 = vmatprep.subr.mxu0 0.0
    %312 = vmatpush1.msra.mxu0 0.0
    %313 = vmatprep.subr.mxu0 0.0
    %314 = vmatpush1.msra.mxu0 0.0
    %315 = vmatprep.subr.mxu0 0.0
    %316 = vmatpush1.msra.mxu0 0.0
    %317 = vmatprep.mubr.f32.mxu0 0.0
    %318 = vmatmul.mubr.f32.gmra.mrb[0].mxu0 %v242
    %v319 = vpop.f32.mrb[0].mxu0
    %v320 = vadd.f32 0.0, %v319
    %v321 = vpop.f32.mrb[0].mxu0
    %322 = vmatprep.mubr.f32.mxu0 0.0
    %323 = vmatmul.mubr.f32.gmra.mrb[0].mxu0 %v245
    %v324 = vpop.f32.mrb[0].mxu0
    %v325 = vadd.f32 0.0, %v324
    %v326 = vpop.f32.mrb[0].mxu0
    %327 = vmatprep.mubr.f32.mxu0 0.0
    %328 = vmatmul.mubr.f32.gmra.mrb[0].mxu0 %v248
    %v329 = vpop.f32.mrb[0].mxu0
    %v330 = vadd.f32 0.0, %v329
    %v331 = vpop.f32.mrb[0].mxu0
    %332 = vmatprep.mubr.f32.mxu0 0.0
    %333 = vmatmul.mubr.f32.gmra.mrb[0].mxu0 %v251
    %v334 = vpop.f32.mrb[0].mxu0
    %v335 = vadd.f32 0.0, %v334
    %v336 = vpop.f32.mrb[0].mxu0
    %337 = vdwg.mxu0
    %v338 = vmul.f32 %v223, %v320
    %v339 = vmul.f32 %v228, %v325
    %v340 = vmul.f32 %v233, %v330
    %v341 = vmul.f32 %v238, %v335
    %v342 = vld [vmem:[%s3] sm:$0xff]
    %v343 = vld [vmem:[%s3 + $0x8] sm:$0xff]
    %v344 = vld [vmem:[%s3 + $0x10] sm:$0xff]
    %v345 = vld [vmem:[%s3 + $0x18] sm:$0xff]
    %v346 = vld [vmem:[%s3 + $0x20] sm:$0xff]
    %v347 = vld [vmem:[%s3 + $0x28] sm:$0xff]
    %v348 = vld [vmem:[%s3 + $0x30] sm:$0xff]
    %v349 = vld [vmem:[%s3 + $0x38] sm:$0xff]
    %v350 = vld [vmem:[%s3 + $0x40] sm:$0xff]
    %vm351 = vcmask 588800
    %v353 = vsel %vm351, %v338, 0
    %v356 = vsel %vm351, %v339, 0
    %v359 = vsel %vm351, %v340, 0
    %v362 = vsel %vm351, %v341, 0
    %364 = vmatprep.subr.mxu0 0.0
    %365 = vmatpush1.msra.mxu0 %v342
    %366 = vmatprep.subr.mxu0 0.0
    %367 = vmatpush1.msra.mxu0 %v343
    %368 = vmatprep.subr.mxu0 0.0
    %369 = vmatpush1.msra.mxu0 %v344
    %370 = vmatprep.subr.mxu0 0.0
    %371 = vmatpush1.msra.mxu0 %v345
    %372 = vmatprep.subr.mxu0 0.0
    %373 = vmatpush1.msra.mxu0 %v346
    %374 = vmatprep.subr.mxu0 0.0
    %375 = vmatpush1.msra.mxu0 %v347
    %376 = vmatprep.subr.mxu0 0.0
    %377 = vmatpush1.msra.mxu0 %v348
    %378 = vmatprep.subr.mxu0 0.0
    %379 = vmatpush1.msra.mxu0 %v349
    %380 = vmatprep.subr.mxu0 0.0
    %381 = vmatpush1.msra.mxu0 %v350
    %382 = vmatprep.subr.mxu0 0.0
    %383 = vmatpush1.msra.mxu0 0.0
    %384 = vmatprep.subr.mxu0 0.0
    %385 = vmatpush1.msra.mxu0 0.0
    %386 = vmatprep.subr.mxu0 0.0
    %387 = vmatpush1.msra.mxu0 0.0
    %388 = vmatprep.subr.mxu0 0.0
    %389 = vmatpush1.msra.mxu0 0.0
    %390 = vmatprep.subr.mxu0 0.0
    %391 = vmatpush1.msra.mxu0 0.0
    %392 = vmatprep.subr.mxu0 0.0
    %393 = vmatpush1.msra.mxu0 0.0
    %394 = vmatprep.subr.mxu0 0.0
    %395 = vmatpush1.msra.mxu0 0.0
    %396 = vmatprep.subr.mxu0 0.0
    %397 = vmatpush1.msra.mxu0 0.0
    %398 = vmatprep.subr.mxu0 0.0
    %399 = vmatpush1.msra.mxu0 0.0
    %400 = vmatprep.subr.mxu0 0.0
    %401 = vmatpush1.msra.mxu0 0.0
    %402 = vmatprep.subr.mxu0 0.0
    %403 = vmatpush1.msra.mxu0 0.0
    %404 = vmatprep.subr.mxu0 0.0
    %405 = vmatpush1.msra.mxu0 0.0
    %406 = vmatprep.subr.mxu0 0.0
    %407 = vmatpush1.msra.mxu0 0.0
    %408 = vmatprep.subr.mxu0 0.0
    %409 = vmatpush1.msra.mxu0 0.0
    %410 = vmatprep.subr.mxu0 0.0
    %411 = vmatpush1.msra.mxu0 0.0
    %412 = vmatprep.subr.mxu0 0.0
    %413 = vmatpush1.msra.mxu0 0.0
    %414 = vmatprep.subr.mxu0 0.0
    %415 = vmatpush1.msra.mxu0 0.0
    %416 = vmatprep.subr.mxu0 0.0
    %417 = vmatpush1.msra.mxu0 0.0
    %418 = vmatprep.subr.mxu0 0.0
    %419 = vmatpush1.msra.mxu0 0.0
    %420 = vmatprep.subr.mxu0 0.0
    %421 = vmatpush1.msra.mxu0 0.0
    %422 = vmatprep.subr.mxu0 0.0
    %423 = vmatpush1.msra.mxu0 0.0
    %424 = vmatprep.subr.mxu0 0.0
    %425 = vmatpush1.msra.mxu0 0.0
    %426 = vmatprep.subr.mxu0 0.0
    %427 = vmatpush1.msra.mxu0 0.0
    %428 = vmatprep.mubr.f32.mxu0 0.0
    %429 = vmatmul.mubr.f32.gmra.mrb[0].mxu0 %v353
    %v430 = vpop.f32.mrb[0].mxu0
    %v431 = vadd.f32 0.0, %v430
    %v432 = vpop.f32.mrb[0].mxu0
    %433 = vmatprep.mubr.f32.mxu0 0.0
    %434 = vmatmul.mubr.f32.gmra.mrb[0].mxu0 %v356
    %v435 = vpop.f32.mrb[0].mxu0
    %v436 = vadd.f32 0.0, %v435
    %v437 = vpop.f32.mrb[0].mxu0
    %438 = vmatprep.mubr.f32.mxu0 0.0
    %439 = vmatmul.mubr.f32.gmra.mrb[0].mxu0 %v359
    %v440 = vpop.f32.mrb[0].mxu0
    %v441 = vadd.f32 0.0, %v440
    %v442 = vpop.f32.mrb[0].mxu0
    %443 = vmatprep.mubr.f32.mxu0 0.0
    %444 = vmatmul.mubr.f32.gmra.mrb[0].mxu0 %v362
    %v445 = vpop.f32.mrb[0].mxu0
    %v446 = vadd.f32 0.0, %v445
    %v447 = vpop.f32.mrb[0].mxu0
    %448 = vdwg.mxu0
    %v449 = vmul.f32 %v431, %v431
    %v450 = vmul.f32 %v436, %v436
    %v451 = vmul.f32 %v441, %v441
    %v452 = vmul.f32 %v446, %v446
    %vm453 = vcmask 195584
    %v454 = vsel %vm453, %v449, 0.0
    %v455 = vsel %vm453, %v450, 0.0
    %v456 = vadd.f32 %v454, %v455
    %v457 = vsel %vm453, %v451, 0.0
    %v458 = vadd.f32 %v456, %v457
    %v459 = vsel %vm453, %v452, 0.0
    %v460 = vadd.f32 %v458, %v459
    %461 = vadd.xlane.f32.xlu0 %v460
    %v462 = vpop.xlane.xlu0 %461
    %v463 = vrot.slane %v462, 4
    %v464 = vadd.f32 %v462, %v463
    %v465 = vrot.slane %v464, 2
    %v466 = vadd.f32 %v464, %v465
    %v467 = vrot.slane %v466, 1
    %v468 = vadd.f32 %v466, %v467
    %s469 = vtos %v468
    %vm470 = vcmp.eq.s32.totalorder %v92, 0
    %v471 = vstv %s54
    %v472 = vsel %vm470, %v471, 0.0
    %vm473 = vcmp.eq.s32.totalorder %v92, 1
    %v474 = vstv %s133
    %v475 = vsel %vm473, %v474, 0.0
    %v476 = vadd.f32 %v472, %v475
    %vm477 = vcmp.eq.s32.totalorder %v92, 2
    %v478 = vstv %s469
    %v479 = vsel %vm477, %v478, 0.0
    %v480 = vadd.f32 %v476, %v479
    %481 = vst [vmem:[#allocation2] sm:$0xff] %v480
    // Predicated region
    $region18: #{tpu_custom_call.1} parent=1 // pred_check
      _
    $region19: #{tpu_custom_call.1} parent=1 // pred_check_branch
      %483 = sbr.rel (0) target = $region21
    $region20: #{tpu_custom_call.1} parent=1 // pred_region
      %s485 = ssub.s32 128, 128
      %486 = vsyncadd [#allocation3], %s485
      %s488 = sshll.u32 [#allocation2], 4
      %s489 = int_to_ptr.vmem [resolvable:$true] %s488
      %491 = dma.vmem_to_hbm [thread:$0]  %s489, 128, %s4, [#allocation3]
    $region21: #{tpu_custom_call.1} parent=1 // pred_fallthru
      _
    // Predicated region
    $region22: #{tpu_custom_call.1} parent=1 // pred_check
      _
    $region23: #{tpu_custom_call.1} parent=1 // pred_check_branch
      %493 = sbr.rel (0) target = $region25
    $region24: #{tpu_custom_call.1} parent=1 // pred_region
      %494 = dma.done [#allocation3], 128
    $region25: #{tpu_custom_call.1} parent=1 // pred_fallthru
      _
    %495 = vsyncpa [#allocation3], 1

</llo_original>
